<compile_context>
chip_gen: v6e
topology: v6e:2x2x1
jax: 0.10.0
libtpu: 0.0.40
codegen_flags: <defaults>
</compile_context>

<pallas_src>
import functools

import jax
import jax.numpy as jnp
from jax.experimental import pallas as pl
from jax.experimental.pallas import tpu as pltpu


_VMEM_BUDGET = 12 * 1024 * 1024   # conservative: fits v5e's 16 MiB default scoped VMEM


def _round_up(x, m):
    return ((x + m - 1) // m) * m


def _vmem_need(t, d, o, o_w, in_itemsize):
    """Double-buffered working-set estimate (bytes) for a batch tile of t rows."""
    return (2 * t * d * in_itemsize        # x tile, double-buffered
            + 2 * 2 * t * o * 4            # mean + tanh(mean) f32 tiles, double-buffered
            + 2 * d * o_w * in_itemsize    # folded weight (charged 2x: default dbl-buffer)
            + 2 * o_w * 4)                 # bias


def _choose_tb(n, d, o, o_w, in_itemsize, budget_bytes=_VMEM_BUDGET, tb_cap=1024):
    """Largest power-of-two multiple of 8 (<= tb_cap, <= round_up(n, 8)) that fits budget."""
    n8 = _round_up(max(n, 1), 8)
    tb = 8
    t = 16
    while t <= min(tb_cap, n8) and _vmem_need(t, d, o, o_w, in_itemsize) <= budget_bytes:
        tb = t
        t *= 2
    # Megacore (v7x): if one tile would cover a decently sized batch, split it so the
    # "parallel" grid axis has >= 2 steps and both TensorCores get work.  The extra
    # ~0.35us grid step is noise on single-TC chips at this size.
    if tb >= n8 and n8 >= 256:
        tb = _round_up((n8 + 1) // 2, 8)
    return tb


def _squashed_mean_kernel(x_ref, w_ref, b_ref, mean_ref, tanh_mean_ref, *, num_out):
    # Single lane-dense MXU matmul (f32 accumulate) on the pre-folded, pre-transposed
    # weight, plus bias; tanh goes to the EUP slot (essentially free).
    full = jnp.dot(x_ref[...], w_ref[...], preferred_element_type=jnp.float32)
    full = full + b_ref[...]
    mean = full[:, :num_out]                 # static lane slice; identity when O % 128 == 0
    mean_ref[...] = mean.astype(mean_ref.dtype)
    tanh_mean_ref[...] = jnp.tanh(mean).astype(tanh_mean_ref.dtype)


def lora_diag_gaussian_forward(x, agent_id, W, b, lora_A, lora_B,
                               log_std0, lora_A_std, lora_B_std,
                               *, lora_alpha, r,
                               std_x_coef=1.0, std_y_coef=0.5,
                               available_actions=None, tb=None,
                               use_bf16_inputs=False):
    """Returns (action_mean, squashed_mean = tanh(action_mean), action_std)."""
    del available_actions  # unused by the continuous (DiagGaussian) action head

    N, D = x.shape
    O = W.shape[0]
    scaling = float(lora_alpha) / float(r)
    aid = jnp.asarray(agent_id, dtype=jnp.int32).reshape(())

    # ---- one-time, batch-independent folds (tiny XLA ops on (D,O)/(O,) tensors) ----
    A = lora_A[aid]                                   # (r, D)
    Bm = lora_B[aid]                                  # (O, r)
    w_eff = (W.T.astype(jnp.float32)
             + scaling * (A.T.astype(jnp.float32) @ Bm.T.astype(jnp.float32)))   # (D, O)

    dW_std = scaling * jnp.squeeze(lora_B_std[aid] @ lora_A_std[aid], -1)         # (O,)
    action_std = jax.nn.sigmoid((log_std0 + dW_std) / std_x_coef) * std_y_coef

    # ---- lane-pad only the small folded weight / bias (MXU operand stays dense);
    #      the batch-sized x and both outputs are NOT padded ----
    o_w = _round_up(O, 128)
    in_dtype = jnp.bfloat16 if use_bf16_inputs else jnp.float32
    itemsize = 2 if use_bf16_inputs else 4
    w_in = jnp.pad(w_eff, ((0, 0), (0, o_w - O))).astype(in_dtype)                # (D, o_w)
    b_in = jnp.pad(b.astype(jnp.float32), (0, o_w - O)).reshape(1, o_w)           # (1, o_w)
    x_in = x.astype(in_dtype)                                                     # no pad

    if tb is None:
        tb = _choose_tb(N, D, O, o_w, itemsize)
    vmem_need = _vmem_need(tb, D, O, o_w, itemsize)

    grid = (pl.cdiv(N, tb),)   # ragged last tile handled by partial-block semantics

    cp_kwargs = dict(dimension_semantics=("parallel",))
    if vmem_need > _VMEM_BUDGET:
        # tb=8 floor (or caller tb) still exceeds the conservative budget (huge D): raise
        # the scoped-VMEM limit explicitly rather than failing to compile.
        # TODO(synk): if the resident (D, o_w) weight alone overflows physical VMEM, a K
        # grid axis ("arbitrary", last) with an f32 accumulator would be needed.
        cp_kwargs["vmem_limit_bytes"] = int(vmem_need + (4 << 20))
    compiler_params = pltpu.CompilerParams(**cp_kwargs)

    cost = pl.CostEstimate(
        flops=int(2 * N * D * o_w + N * o_w),
        transcendentals=int(N * O),
        bytes_accessed=int(N * D * itemsize + D * o_w * itemsize + 4 * o_w + 2 * 4 * N * O),
    )

    kernel = functools.partial(_squashed_mean_kernel, num_out=O)

    mean, tanh_mean = pl.pallas_call(
        kernel,
        out_shape=(jax.ShapeDtypeStruct((N, O), jnp.float32),
                   jax.ShapeDtypeStruct((N, O), jnp.float32)),
        grid=grid,
        in_specs=[
            pl.BlockSpec((tb, D), lambda i: (i, 0)),      # x tile (last tile may be ragged)
            pl.BlockSpec((D, o_w), lambda i: (0, 0)),     # folded weight (resident)
            pl.BlockSpec((1, o_w), lambda i: (0, 0)),     # bias (resident)
        ],
        out_specs=(
            pl.BlockSpec((tb, O), lambda i: (i, 0)),      # action_mean  (unpadded lanes)
            pl.BlockSpec((tb, O), lambda i: (i, 0)),      # tanh(action_mean)
        ),
        compiler_params=compiler_params,
        cost_estimate=cost,
    )(x_in, w_in, b_in)

    return mean, tanh_mean, action_std


def _reference(x, agent_id, W, b, lora_A, lora_B, log_std0, lora_A_std, lora_B_std,
               lora_alpha, r, std_x_coef=1.0, std_y_coef=0.5):
    s = lora_alpha / r
    a = lora_A[agent_id]
    bm = lora_B[agent_id]
    mean = x @ W.T + b + s * ((x @ a.T) @ bm.T)
    dW = s * jnp.squeeze(lora_B_std[agent_id] @ lora_A_std[agent_id], -1)
    std = jax.nn.sigmoid((log_std0 + dW) / std_x_coef) * std_y_coef
    return mean, jnp.tanh(mean), std


if __name__ == "__main__":
    # Small shapes consistent with LoRA_DiagGaussian3(num_inputs, num_outputs, r, num_agents)
    batch, num_inputs, num_outputs = 6, 32, 6
    num_agents, r, lora_alpha, gain = 3, 4, 1, 0.01
    std_x_coef, std_y_coef = 1.0, 0.5

    key = jax.random.PRNGKey(0)
    k_w, k_a, k_b, k_as, k_bs, k_x = jax.random.split(key, 6)

    # Deterministic "orthogonal init with gain" for the base weight, zero bias
    # (mirrors init_(MA_Linear(...)) with nn.init.orthogonal_, gain=0.01).
    w_raw = jax.random.normal(k_w, (num_outputs, num_inputs), jnp.float32)
    q, _ = jnp.linalg.qr(w_raw.T)                    # (num_inputs, num_outputs)
    W = (gain * q.T).astype(jnp.float32)             # (num_outputs, num_inputs)
    b = jnp.zeros((num_outputs,), jnp.float32)

    # Per-agent LoRA adapters for the mean path (synthetic, nonzero to exercise LoRA).
    lora_A = 0.1 * jax.random.normal(k_a, (num_agents, r, num_inputs), jnp.float32)
    lora_B = 0.1 * jax.random.normal(k_b, (num_agents, num_outputs, r), jnp.float32)

    # log-std path: shared weight W0 = log_std = ones * std_x_coef, plus per-agent adapters.
    log_std0 = jnp.ones((num_outputs,), jnp.float32) * std_x_coef
    lora_A_std = 0.1 * jax.random.normal(k_as, (num_agents, r, 1), jnp.float32)
    lora_B_std = 0.1 * jax.random.normal(k_bs, (num_agents, num_outputs, r), jnp.float32)

    x = jax.random.normal(k_x, (batch, num_inputs), jnp.float32)
    agent_id = jnp.array(1, dtype=jnp.int32)

    fwd = jax.jit(functools.partial(
        lora_diag_gaussian_forward,
        lora_alpha=lora_alpha, r=r,
        std_x_coef=std_x_coef, std_y_coef=std_y_coef))

    mean, tanh_mean, std = fwd(x, agent_id, W, b, lora_A, lora_B,
                               log_std0, lora_A_std, lora_B_std)
    jax.block_until_ready((mean, tanh_mean, std))

    ref_mean, ref_tanh, ref_std = _reference(
        x, 1, W, b, lora_A, lora_B, log_std0, lora_A_std, lora_B_std,
        lora_alpha, r, std_x_coef, std_y_coef)

    assert mean.shape == (batch, num_outputs) and tanh_mean.shape == (batch, num_outputs)
    assert jnp.allclose(mean, ref_mean, rtol=1e-4, atol=1e-5)
    assert jnp.allclose(tanh_mean, ref_tanh, rtol=1e-4, atol=1e-5)
    assert jnp.allclose(std, ref_std, rtol=1e-5, atol=1e-6)

    print("KERNEL_OK")
</pallas_src>

<mosaic_0001>
module attributes {stable_mosaic.version = 11 : i64} {
  func.func @_squashed_mean_kernel(%arg0: i32, %arg1: memref<8x32xf32, #tpu.memory_space<vmem>>, %arg2: memref<32x128xf32, #tpu.memory_space<vmem>>, %arg3: memref<1x128xf32, #tpu.memory_space<vmem>>, %arg4: memref<8x6xf32, #tpu.memory_space<vmem>>, %arg5: memref<8x6xf32, #tpu.memory_space<vmem>>) attributes {dimension_semantics = [#tpu.dimension_semantics<parallel>], iteration_bounds = array<i64: 1>, scalar_prefetch = 0 : i64, scratch_operands = 0 : i64, tpu.core_type = #tpu.core_type<tc>, window_params = [{transform_indices = @transform_0, window_bounds = array<i64: 8, 32>}, {pipeline_mode = #tpu.pipeline_mode<synchronous>, transform_indices = @transform_1, window_bounds = array<i64: 32, 128>}, {pipeline_mode = #tpu.pipeline_mode<synchronous>, transform_indices = @transform_2, window_bounds = array<i64: 1, 128>}, {transform_indices = @transform_3, window_bounds = array<i64: 8, 6>}, {transform_indices = @transform_4, window_bounds = array<i64: 8, 6>}]} {
    %c0 = arith.constant 0 : index
    %c0_0 = arith.constant 0 : index
    %0 = vector.load %arg1[%c0, %c0_0] : memref<8x32xf32, #tpu.memory_space<vmem>>, vector<8x32xf32>
    %c0_1 = arith.constant 0 : index
    %c0_2 = arith.constant 0 : index
    %1 = vector.load %arg2[%c0_1, %c0_2] : memref<32x128xf32, #tpu.memory_space<vmem>>, vector<32x128xf32>
    %cst = arith.constant dense<0.000000e+00> : vector<8x128xf32>
    %2 = tpu.matmul %0, %1, %cst {dimension_numbers = #tpu.dot_dimension_numbers<[1], [0], [0], [1], [0, 0, 1, 1], [], []>} : vector<8x32xf32>, vector<32x128xf32>, vector<8x128xf32> -> vector<8x128xf32>
    %c0_3 = arith.constant 0 : index
    %c0_4 = arith.constant 0 : index
    %3 = vector.load %arg3[%c0_3, %c0_4] : memref<1x128xf32, #tpu.memory_space<vmem>>, vector<1x128xf32>
    %4 = vector.broadcast %3 : vector<1x128xf32> to vector<8x128xf32>
    %5 = arith.addf %2, %4 : vector<8x128xf32>
    %6 = vector.extract_strided_slice %5 {offsets = [0, 0], sizes = [8, 6], strides = [1, 1]} : vector<8x128xf32> to vector<8x6xf32>
    %c0_5 = arith.constant 0 : index
    %c0_6 = arith.constant 0 : index
    %7 = vector.load %arg4[%c0_5, %c0_6] : memref<8x6xf32, #tpu.memory_space<vmem>>, vector<8x6xf32>
    tpu.vector_store %arg4[%c0_5, %c0_6], %6 {strides = array<i32>} : memref<8x6xf32, #tpu.memory_space<vmem>>, vector<8x6xf32>,
    %8 = math.tanh %6 : vector<8x6xf32>
    %c0_7 = arith.constant 0 : index
    %c0_8 = arith.constant 0 : index
    %9 = vector.load %arg5[%c0_7, %c0_8] : memref<8x6xf32, #tpu.memory_space<vmem>>, vector<8x6xf32>
    tpu.vector_store %arg5[%c0_7, %c0_8], %8 {strides = array<i32>} : memref<8x6xf32, #tpu.memory_space<vmem>>, vector<8x6xf32>,
    return
  }
  func.func @transform_0(%arg0: i32) -> (i32, i32) {
    %c0_i32 = arith.constant 0 : i32
    %c0_i32_0 = arith.constant 0 : i32
    return %arg0, %c0_i32 : i32, i32
  }
  func.func @transform_1(%arg0: i32) -> (i32, i32) {
    %c0_i32 = arith.constant 0 : i32
    %c0_i32_0 = arith.constant 0 : i32
    %c0_i32_1 = arith.constant 0 : i32
    return %c0_i32, %c0_i32_0 : i32, i32
  }
  func.func @transform_2(%arg0: i32) -> (i32, i32) {
    %c0_i32 = arith.constant 0 : i32
    %c0_i32_0 = arith.constant 0 : i32
    %c0_i32_1 = arith.constant 0 : i32
    return %c0_i32, %c0_i32_0 : i32, i32
  }
  func.func @transform_3(%arg0: i32) -> (i32, i32) {
    %c0_i32 = arith.constant 0 : i32
    %c0_i32_0 = arith.constant 0 : i32
    return %arg0, %c0_i32 : i32, i32
  }
  func.func @transform_4(%arg0: i32) -> (i32, i32) {
    %c0_i32 = arith.constant 0 : i32
    %c0_i32_0 = arith.constant 0 : i32
    return %arg0, %c0_i32 : i32, i32
  }
}

</mosaic_0001>

<llo_original>
// kernel: lora_diag_gaussian_forward.1
$region0: #{lora_diag_gaussian_forward.1}
  #allocation0 [shape = 'u32[]', space=smem, size = 0x4, offset = 0x4, fixed_abs, tag = 'smem constant byte address 0x4 - core index']
  #allocation1 [shape = 'u32[144,128]{1,0:T(1,128)}', space=vmem, size = 0x12000, scoped, tag = 'internal scratch']
  %s0 = inlined_call_operand.vmem [shape: f32[6,32], index: 0, kind: input, shape index: {}]
  %s1 = inlined_call_operand.vmem [shape: f32[32,128], index: 1, kind: input, shape index: {}]
  %s2 = inlined_call_operand.vmem [shape: f32[1,128], index: 2, kind: input, shape index: {}]
  %s3 = inlined_call_operand.hbm [shape: f32[6,6], index: 3, kind: output, shape index: {0}]
  %s4 = inlined_call_operand.hbm [shape: f32[6,6], index: 4, kind: output, shape index: {1}]
  %5 = xla_tuple %s3, %s4
  %s6 = sld [smem:[#allocation0]]
  $region30: #{lora_diag_gaussian_forward.1} parent=0
    _
  %s8 = ssub.s32 1, %s6
  %s9 = scalar_select 0, %s8, %s6
  $region1: #{lora_diag_gaussian_forward.1} parent=0
    #allocation2 [shape = 'u8[4096]{0}', space=vmem, size = 0x1000, scoped, tag = 'output window, operand 0, single buffered']
    #allocation3 [shape = 's32[1]{0}', space=sflag, size = 0x4, scoped, tag = 'scoped memory for lora_diag_gaussian_forward.1']
    #allocation4 [shape = 'u8[4096]{0}', space=vmem, size = 0x1000, scoped, tag = 'output window, operand 1, single buffered']
    #allocation5 [shape = 's32[1]{0}', space=sflag, size = 0x4, scoped, tag = 'scoped memory for lora_diag_gaussian_forward.1']
    %10 = vsyncpa [#allocation3], 0
    %11 = vsyncpa [#allocation5], 0
    // Predicated region
    $region2: #{lora_diag_gaussian_forward.1} parent=1 // pred_check
      _
    $region3: #{lora_diag_gaussian_forward.1} parent=1 // pred_check_branch
      %13 = sbr.rel (0) target = $region5
    $region4: #{lora_diag_gaussian_forward.1} parent=1 // pred_region
      _
    $region5: #{lora_diag_gaussian_forward.1} parent=1 // pred_fallthru
      _
    // Predicated region
    $region6: #{lora_diag_gaussian_forward.1} parent=1 // pred_check
      _
    $region7: #{lora_diag_gaussian_forward.1} parent=1 // pred_check_branch
      %15 = sbr.rel (0) target = $region9
    $region8: #{lora_diag_gaussian_forward.1} parent=1 // pred_region
      _
    $region9: #{lora_diag_gaussian_forward.1} parent=1 // pred_fallthru
      _
    // Predicated region
    $region10: #{lora_diag_gaussian_forward.1} parent=1 // pred_check
      _
    $region11: #{lora_diag_gaussian_forward.1} parent=1 // pred_check_branch
      %17 = sbr.rel (0) target = $region13
    $region12: #{lora_diag_gaussian_forward.1} parent=1 // pred_region
      _
    $region13: #{lora_diag_gaussian_forward.1} parent=1 // pred_fallthru
      _
    %v18 = vld [vmem:[%s0] sm:$0xff]
    %v19 = vld [vmem:[%s1] sm:$0xff]
    %v20 = vld [vmem:[%s1 + $0x8] sm:$0xff]
    %v21 = vld [vmem:[%s1 + $0x10] sm:$0xff]
    %v22 = vld [vmem:[%s1 + $0x18] sm:$0xff]
    %v23 = vld [vmem:[%s2] sm:$0x1]
    %v25 = vlaneseq
    %v26 = vshrl.u32 %v25, 7
    %v27 = vsub.s32 0, %v26
    %v28 = vrot.slane %v23, %v27
    %vm30 = vcmask 261120
    %v32 = vsel %vm30, %v18, 0
    %34 = vmatprep.subr.mxu0 0.0
    %35 = vmatpush1.msra.mxu0 0.0
    %36 = vmatprep.subr.mxu0 0.0
    %37 = vmatpush1.msra.mxu0 0.0
    %38 = vmatprep.subr.mxu0 0.0
    %39 = vmatpush1.msra.mxu0 0.0
    %40 = vmatprep.subr.mxu0 0.0
    %41 = vmatpush1.msra.mxu0 0.0
    %42 = vmatprep.subr.mxu0 0.0
    %43 = vmatpush1.msra.mxu0 0.0
    %44 = vmatprep.subr.mxu0 0.0
    %45 = vmatpush1.msra.mxu0 0.0
    %46 = vmatprep.subr.mxu0 0.0
    %47 = vmatpush1.msra.mxu0 0.0
    %48 = vmatprep.subr.mxu0 0.0
    %49 = vmatpush1.msra.mxu0 0.0
    %50 = vmatprep.subr.mxu0 0.0
    %51 = vmatpush1.msra.mxu0 0.0
    %52 = vmatprep.subr.mxu0 0.0
    %53 = vmatpush1.msra.mxu0 0.0
    %54 = vmatprep.subr.mxu0 0.0
    %55 = vmatpush1.msra.mxu0 0.0
    %56 = vmatprep.subr.mxu0 0.0
    %57 = vmatpush1.msra.mxu0 0.0
    %58 = vmatprep.subr.mxu0 0.0
    %59 = vmatpush1.msra.mxu0 %v22
    %60 = vmatprep.subr.mxu0 0.0
    %61 = vmatpush1.msra.mxu0 %v21
    %62 = vmatprep.subr.mxu0 0.0
    %63 = vmatpush1.msra.mxu0 %v20
    %64 = vmatprep.subr.mxu0 0.0
    %65 = vmatpush1.msra.mxu0 %v19
    %66 = vmatprep.subr.mxu0 0.0
    %67 = vmatpush2.msra.mxu0 0.0
    %68 = vmatprep.subr.mxu0 0.0
    %69 = vmatpush2.msra.mxu0 0.0
    %70 = vmatprep.subr.mxu0 0.0
    %71 = vmatpush2.msra.mxu0 0.0
    %72 = vmatprep.subr.mxu0 0.0
    %73 = vmatpush2.msra.mxu0 0.0
    %74 = vmatprep.subr.mxu0 0.0
    %75 = vmatpush2.msra.mxu0 0.0
    %76 = vmatprep.subr.mxu0 0.0
    %77 = vmatpush2.msra.mxu0 0.0
    %78 = vmatprep.subr.mxu0 0.0
    %79 = vmatpush2.msra.mxu0 0.0
    %80 = vmatprep.subr.mxu0 0.0
    %81 = vmatpush2.msra.mxu0 0.0
    %82 = vmatprep.subr.mxu0 0.0
    %83 = vmatpush2.msra.mxu0 0.0
    %84 = vmatprep.subr.mxu0 0.0
    %85 = vmatpush2.msra.mxu0 0.0
    %86 = vmatprep.subr.mxu0 0.0
    %87 = vmatpush2.msra.mxu0 0.0
    %88 = vmatprep.subr.mxu0 0.0
    %89 = vmatpush2.msra.mxu0 0.0
    %90 = vmatprep.subr.mxu0 0.0
    %91 = vmatpush2.msra.mxu0 0.0
    %92 = vmatprep.subr.mxu0 0.0
    %93 = vmatpush2.msra.mxu0 0.0
    %94 = vmatprep.subr.mxu0 0.0
    %95 = vmatpush2.msra.mxu0 0.0
    %96 = vmatprep.subr.mxu0 0.0
    %97 = vmatpush2.msra.mxu0 0.0
    %98 = vmatprep.mubr.f32.mxu0 0.0
    %99 = vmatmul.mubr.f32.gmra.mxu0 %v32
    %v100 = vpop.f32.mrf.mxu0
    %v101 = vadd.f32 %v28, %v100
    %v102 = vpop.f32.mrf.mxu0
    %103 = vdwg.mxu0
    %vm104 = vcmask 48128
    %105 = vst.msk [vmem:[#allocation2] sm:$0xff] %vm104, %v101
    %v106 = vtanh.pop %v101
    %107 = vst.msk [vmem:[#allocation4] sm:$0xff] %vm104, %v106
    // Predicated region
    $region14: #{lora_diag_gaussian_forward.1} parent=1 // pred_check
      _
    $region15: #{lora_diag_gaussian_forward.1} parent=1 // pred_check_branch
      %109 = sbr.rel (0) target = $region17
    $region16: #{lora_diag_gaussian_forward.1} parent=1 // pred_region
      %s111 = ssub.s32 128, 128
      %112 = vsyncadd [#allocation3], %s111
      %s114 = sshll.u32 [#allocation2], 4
      %s115 = int_to_ptr.vmem [resolvable:$true] %s114
      %117 = dma.vmem_to_hbm [thread:$0]  %s115, 128, %s3, [#allocation3]
    $region17: #{lora_diag_gaussian_forward.1} parent=1 // pred_fallthru
      _
    // Predicated region
    $region18: #{lora_diag_gaussian_forward.1} parent=1 // pred_check
      _
    $region19: #{lora_diag_gaussian_forward.1} parent=1 // pred_check_branch
      %119 = sbr.rel (0) target = $region21
    $region20: #{lora_diag_gaussian_forward.1} parent=1 // pred_region
      %s121 = ssub.s32 128, 128
      %122 = vsyncadd [#allocation5], %s121
      %s124 = sshll.u32 [#allocation4], 4
      %s125 = int_to_ptr.vmem [resolvable:$true] %s124
      %127 = dma.vmem_to_hbm [thread:$0]  %s125, 128, %s4, [#allocation5]
    $region21: #{lora_diag_gaussian_forward.1} parent=1 // pred_fallthru
      _
    // Predicated region
    $region22: #{lora_diag_gaussian_forward.1} parent=1 // pred_check
      _
    $region23: #{lora_diag_gaussian_forward.1} parent=1 // pred_check_branch
      %129 = sbr.rel (0) target = $region25
    $region24: #{lora_diag_gaussian_forward.1} parent=1 // pred_region
      %130 = dma.done [#allocation3], 128
    $region25: #{lora_diag_gaussian_forward.1} parent=1 // pred_fallthru
      _
    // Predicated region
    $region26: #{lora_diag_gaussian_forward.1} parent=1 // pred_check
      _
    $region27: #{lora_diag_gaussian_forward.1} parent=1 // pred_check_branch
      %132 = sbr.rel (0) target = $region29
    $region28: #{lora_diag_gaussian_forward.1} parent=1 // pred_region
      %133 = dma.done [#allocation5], 128
    $region29: #{lora_diag_gaussian_forward.1} parent=1 // pred_fallthru
      _
    %134 = vsyncpa [#allocation3], 1
    %135 = vsyncpa [#allocation5], 1

</llo_original>
